<compile_context>
chip_gen: v6e
topology: v6e:2x2x1
jax: 0.10.0
libtpu: 0.0.40
codegen_flags: <defaults>
</compile_context>

<pallas_src>
import jax
import jax.numpy as jnp
from jax.experimental import pallas as pl
from jax.experimental.pallas import tpu as pltpu


def _attention_kernel(z_ref, w1_ref, b1_ref, w2_ref, o_ref):
    # z_ref : (Bt, N, D)   w1_ref : (D, H)   b1_ref : (1, H)   w2_ref : (1, H)
    # o_ref : (Bt, D)
    bt, n, d = z_ref.shape

    z = z_ref[...].astype(jnp.float32)                       # (Bt, N, D)
    zf = z.reshape(bt * n, d)                                 # leading-dim merge
                                                              # (layout-preserving for N % 8 == 0)

    # Projection MLP: one big MXU matmul, bias + tanh on VPU/EUP,
    # then scores via VPU multiply + lane reduction (no (.,1)-output matmul).
    h = jnp.dot(zf, w1_ref[...].astype(jnp.float32),
                preferred_element_type=jnp.float32)           # (Bt*N, H)
    h = jnp.tanh(h + b1_ref[...].astype(jnp.float32))         # (Bt*N, H)
    s = jnp.sum(h * w2_ref[...].astype(jnp.float32),
                axis=-1, keepdims=True)                       # (Bt*N, 1)
    s = s.reshape(bt, n, 1)                                   # per-batch scores

    # Softmax over the token axis; normalization deferred to a single scale.
    m = jnp.max(s, axis=1, keepdims=True)                     # (Bt, 1, 1)
    e = jnp.exp(s - m)                                        # (Bt, N, 1)
    denom = jnp.sum(e, axis=1, keepdims=True)                 # (Bt, 1, 1)
    inv = pl.reciprocal(denom, approx=True)                   # EUP slot

    # Weighted sum over tokens (VPU form; small N). For very large N this
    # could become an MXU contraction instead.
    wsum = jnp.sum(e * z, axis=1)                             # (Bt, D)
    o_ref[...] = (wsum * inv[:, 0, :]).astype(o_ref.dtype)


def _choose_block_b(B, N, D, itemsize=4):
    """Pick batches-per-block: big enough to amortize grid overhead, small
    enough for VMEM (v7x has only 64 MiB), and leave >=2 grid blocks so the
    two v7x TensorCores both get work."""
    vmem_budget = 32 * 1024 * 1024                 # double-buffered z input budget
    max_bt_vmem = max(1, vmem_budget // (2 * N * D * itemsize))
    bt = min(B, max(1, 512 // max(N, 1)), max_bt_vmem)
    if B >= 2:
        bt = min(bt, max(1, B // 2))               # keep >= 2 grid blocks
    if bt >= 8:
        bt -= bt % 8                               # sublane-aligned output blocks
    return max(1, bt)


def attention_forward(z, w1, b1, w2, *, block_b=None):
    """z: (B, N, D) float32 -> (B, D) float32."""
    B, N, D = z.shape
    H = w1.shape[1]
    b1_2d = b1.reshape(1, H)
    w2_row = w2.reshape(1, H)

    bt = block_b if block_b is not None else _choose_block_b(B, N, D, z.dtype.itemsize)
    b_pad = pl.cdiv(B, bt) * bt
    zp = z if b_pad == B else jnp.pad(z, ((0, b_pad - B), (0, 0), (0, 0)))

    out = pl.pallas_call(
        _attention_kernel,
        out_shape=jax.ShapeDtypeStruct((b_pad, D), z.dtype),
        grid_spec=pltpu.PrefetchScalarGridSpec(
            num_scalar_prefetch=0,
            grid=(b_pad // bt,),
            in_specs=[
                pl.BlockSpec((bt, N, D), lambda b: (b, 0, 0)),   # Bt batches of z per step
                pl.BlockSpec((D, H), lambda b: (0, 0)),          # w1 (full, resident)
                pl.BlockSpec((1, H), lambda b: (0, 0)),          # b1 (full)
                pl.BlockSpec((1, H), lambda b: (0, 0)),          # w2 as a (1, H) row
            ],
            out_specs=pl.BlockSpec((bt, D), lambda b: (b, 0)),   # 8+ sublane rows per store
        ),
        compiler_params=pltpu.CompilerParams(
            dimension_semantics=("parallel",),
            vmem_limit_bytes=48 * 1024 * 1024,
        ),
    )(zp, w1, b1_2d, w2_row)

    return out[:B] if b_pad != B else out


def attention_reference(z, w1, b1, w2):
    """Pure-JAX reference matching the PyTorch forward."""
    w = jnp.tanh(jnp.einsum("bnd,dh->bnh", z, w1) + b1) @ w2.reshape(-1, 1)  # (B,N,1)
    beta = jax.nn.softmax(w, axis=1)
    return jnp.sum(beta * z, axis=1)


if __name__ == "__main__":
    B, N, D, H = 16, 8, 32, 16   # batch, tokens, in_size, hidden_size

    key = jax.random.PRNGKey(0)
    kz, k1, k2, k3 = jax.random.split(key, 4)

    # Deterministic parameter init (PyTorch-Linear-style uniform bounds).
    bound1 = 1.0 / jnp.sqrt(D)
    bound2 = 1.0 / jnp.sqrt(H)
    z = jax.random.normal(kz, (B, N, D), dtype=jnp.float32)
    w1 = jax.random.uniform(k1, (D, H), minval=-bound1, maxval=bound1,
                            dtype=jnp.float32)
    b1 = jax.random.uniform(k2, (H,), minval=-bound1, maxval=bound1,
                            dtype=jnp.float32)
    w2 = jax.random.uniform(k3, (H,), minval=-bound2, maxval=bound2,
                            dtype=jnp.float32)

    out = attention_forward(z, w1, b1, w2)
    out = jax.block_until_ready(out)

    ref = attention_reference(z, w1, b1, w2)
    assert out.shape == (B, D)
    # Tolerance loosened slightly for the approximate (EUP) softmax reciprocal.
    assert jnp.allclose(out, ref, atol=5e-3, rtol=5e-3), "mismatch vs reference"

    print("KERNEL_OK")
</pallas_src>

<mosaic_0001>
module attributes {stable_mosaic.version = 11 : i64} {
  func.func @_attention_kernel(%arg0: i32, %arg1: memref<8x8x32xf32, #tpu.memory_space<vmem>>, %arg2: memref<32x16xf32, #tpu.memory_space<vmem>>, %arg3: memref<1x16xf32, #tpu.memory_space<vmem>>, %arg4: memref<1x16xf32, #tpu.memory_space<vmem>>, %arg5: memref<8x32xf32, #tpu.memory_space<vmem>>) attributes {dimension_semantics = [#tpu.dimension_semantics<parallel>], iteration_bounds = array<i64: 2>, scalar_prefetch = 0 : i64, scratch_operands = 0 : i64, tpu.core_type = #tpu.core_type<tc>, window_params = [{transform_indices = @transform_0, window_bounds = array<i64: 8, 8, 32>}, {pipeline_mode = #tpu.pipeline_mode<synchronous>, transform_indices = @transform_1, window_bounds = array<i64: 32, 16>}, {pipeline_mode = #tpu.pipeline_mode<synchronous>, transform_indices = @transform_2, window_bounds = array<i64: 1, 16>}, {pipeline_mode = #tpu.pipeline_mode<synchronous>, transform_indices = @transform_3, window_bounds = array<i64: 1, 16>}, {transform_indices = @transform_4, window_bounds = array<i64: 8, 32>}]} {
    %c0 = arith.constant 0 : index
    %c0_0 = arith.constant 0 : index
    %c0_1 = arith.constant 0 : index
    %0 = vector.load %arg1[%c0, %c0_0, %c0_1] : memref<8x8x32xf32, #tpu.memory_space<vmem>>, vector<8x8x32xf32>
    %1 = vector.shape_cast %0 : vector<8x8x32xf32> to vector<64x32xf32>
    %c0_2 = arith.constant 0 : index
    %c0_3 = arith.constant 0 : index
    %2 = vector.load %arg2[%c0_2, %c0_3] : memref<32x16xf32, #tpu.memory_space<vmem>>, vector<32x16xf32>
    %cst = arith.constant dense<0.000000e+00> : vector<64x16xf32>
    %3 = tpu.matmul %1, %2, %cst {dimension_numbers = #tpu.dot_dimension_numbers<[1], [0], [0], [1], [0, 0, 1, 1], [], []>} : vector<64x32xf32>, vector<32x16xf32>, vector<64x16xf32> -> vector<64x16xf32>
    %c0_4 = arith.constant 0 : index
    %c0_5 = arith.constant 0 : index
    %4 = vector.load %arg3[%c0_4, %c0_5] : memref<1x16xf32, #tpu.memory_space<vmem>>, vector<1x16xf32>
    %5 = vector.broadcast %4 : vector<1x16xf32> to vector<64x16xf32>
    %6 = arith.addf %3, %5 : vector<64x16xf32>
    %7 = math.tanh %6 : vector<64x16xf32>
    %c0_6 = arith.constant 0 : index
    %c0_7 = arith.constant 0 : index
    %8 = vector.load %arg4[%c0_6, %c0_7] : memref<1x16xf32, #tpu.memory_space<vmem>>, vector<1x16xf32>
    %9 = vector.broadcast %8 : vector<1x16xf32> to vector<64x16xf32>
    %10 = arith.mulf %7, %9 : vector<64x16xf32>
    %cst_8 = arith.constant dense<0.000000e+00> : vector<64xf32>
    %11 = vector.multi_reduction <add>, %10, %cst_8 [1] : vector<64x16xf32> to vector<64xf32>
    %12 = vector.shape_cast %11 : vector<64xf32> to vector<64x1xf32>
    %13 = vector.shape_cast %12 : vector<64x1xf32> to vector<8x8x1xf32>
    %cst_9 = arith.constant dense<0xFF800000> : vector<8x1xf32>
    %14 = vector.multi_reduction <maximumf>, %13, %cst_9 [1] : vector<8x8x1xf32> to vector<8x1xf32>
    %15 = vector.shape_cast %14 : vector<8x1xf32> to vector<8x1x1xf32>
    %16 = vector.broadcast %15 : vector<8x1x1xf32> to vector<8x8x1xf32>
    %17 = arith.subf %13, %16 : vector<8x8x1xf32>
    %18 = math.exp %17 : vector<8x8x1xf32>
    %cst_10 = arith.constant dense<0.000000e+00> : vector<8x1xf32>
    %19 = vector.multi_reduction <add>, %18, %cst_10 [1] : vector<8x8x1xf32> to vector<8x1xf32>
    %20 = vector.shape_cast %19 : vector<8x1xf32> to vector<8x1x1xf32>
    %21 = tpu.reciprocal %20 {approx = true} : vector<8x1x1xf32> -> vector<8x1x1xf32>
    %22 = vector.broadcast %18 : vector<8x8x1xf32> to vector<8x8x32xf32>
    %23 = arith.mulf %22, %0 : vector<8x8x32xf32>
    %cst_11 = arith.constant dense<0.000000e+00> : vector<8x32xf32>
    %24 = vector.multi_reduction <add>, %23, %cst_11 [1] : vector<8x8x32xf32> to vector<8x32xf32>
    %25 = vector.shape_cast %21 : vector<8x1x1xf32> to vector<8x1xf32>
    %26 = vector.broadcast %25 : vector<8x1xf32> to vector<8x32xf32>
    %27 = arith.mulf %24, %26 : vector<8x32xf32>
    %c0_12 = arith.constant 0 : index
    %c0_13 = arith.constant 0 : index
    %28 = vector.load %arg5[%c0_12, %c0_13] : memref<8x32xf32, #tpu.memory_space<vmem>>, vector<8x32xf32>
    tpu.vector_store %arg5[%c0_12, %c0_13], %27 {strides = array<i32>} : memref<8x32xf32, #tpu.memory_space<vmem>>, vector<8x32xf32>,
    return
  }
  func.func @transform_0(%arg0: i32) -> (i32, i32, i32) {
    %c0_i32 = arith.constant 0 : i32
    %c0_i32_0 = arith.constant 0 : i32
    %c0_i32_1 = arith.constant 0 : i32
    return %arg0, %c0_i32, %c0_i32_0 : i32, i32, i32
  }
  func.func @transform_1(%arg0: i32) -> (i32, i32) {
    %c0_i32 = arith.constant 0 : i32
    %c0_i32_0 = arith.constant 0 : i32
    %c0_i32_1 = arith.constant 0 : i32
    return %c0_i32, %c0_i32_0 : i32, i32
  }
  func.func @transform_2(%arg0: i32) -> (i32, i32) {
    %c0_i32 = arith.constant 0 : i32
    %c0_i32_0 = arith.constant 0 : i32
    %c0_i32_1 = arith.constant 0 : i32
    return %c0_i32, %c0_i32_0 : i32, i32
  }
  func.func @transform_3(%arg0: i32) -> (i32, i32) {
    %c0_i32 = arith.constant 0 : i32
    %c0_i32_0 = arith.constant 0 : i32
    %c0_i32_1 = arith.constant 0 : i32
    return %c0_i32, %c0_i32_0 : i32, i32
  }
  func.func @transform_4(%arg0: i32) -> (i32, i32) {
    %c0_i32 = arith.constant 0 : i32
    %c0_i32_0 = arith.constant 0 : i32
    return %arg0, %c0_i32 : i32, i32
  }
}

</mosaic_0001>

<llo_original>
// kernel: tpu_custom_call.1
$region0: #{tpu_custom_call.1}
  #allocation0 [shape = 'u32[]', space=smem, size = 0x4, offset = 0x4, fixed_abs, tag = 'smem constant byte address 0x4 - core index']
  #allocation1 [shape = 'u32[144,128]{1,0:T(1,128)}', space=vmem, size = 0x12000, scoped, tag = 'internal scratch']
  %s0 = inlined_call_operand.hbm [shape: f32[16,8,32], index: 0, kind: input, shape index: {}]
  %s1 = inlined_call_operand.vmem [shape: f32[32,16], index: 1, kind: input, shape index: {}]
  %s2 = inlined_call_operand.vmem [shape: f32[1,16], index: 2, kind: input, shape index: {}]
  %s3 = inlined_call_operand.vmem [shape: f32[1,16], index: 3, kind: input, shape index: {}]
  %s4 = inlined_call_operand.hbm [shape: f32[16,32], index: 4, kind: output, shape index: {}]
  %s5 = sld [smem:[#allocation0]]
  $region53: #{tpu_custom_call.1} parent=0
    _
  %s7 = ssub.s32 1, %s5
  %s8 = scalar_select 0, %s7, %s5
  $region1: #{tpu_custom_call.1} parent=0
    #allocation2 [shape = 'u8[65536]{0}', space=vmem, size = 0x10000, scoped, tag = 'input window, operand 0']
    #allocation3 [shape = 's32[2]{0}', space=sflag, size = 0x8, scoped, tag = 'scoped memory for tpu_custom_call.1']
    #allocation4 [shape = 's32[2]{0}', space=sflag, size = 0x8, scoped, tag = 'scoped memory for tpu_custom_call.1']
    #allocation5 [shape = 'u8[8192]{0}', space=vmem, size = 0x2000, scoped, tag = 'output window, operand 0']
    %9 = vsyncpa [#allocation3], 0
    %s10 = scalar_lea.sflag [#allocation3], 1
    %11 = vsyncpa %s10, 0
    %12 = vsyncpa [#allocation4], 0
    %s13 = scalar_lea.sflag [#allocation4], 1
    %14 = vsyncpa %s13, 0
    loop: start=0, step=1, limit=4
    $region2: #{tpu_custom_call.1} parent=1 // loop_pre_header
      _
    $region3: #{tpu_custom_call.1} parent=1 // loop_header
      %s16 = sphi 0, %s20
      %p17 = scmp.ge.s32.totalorder %s16, 4
      %s26 = sphi 0, %s28
      %s29 = sphi 0, %s26
      %s30 = sphi 0, %s29
      %s46 = sphi 0, %s30
      %s50 = sphi 0, %s50
      %s52 = sphi 0, %s50
      %s53 = sphi 0, %s52
      %s67 = sphi 0, %s53
      %s71 = sphi 0, %s71
      %s73 = sphi 0, %s71
      %s74 = sphi 0, %s73
      %s88 = sphi 0, %s74
      %s92 = sphi 0, %s92
      %s94 = sphi 0, %s92
      %s95 = sphi 0, %s94
      %s109 = sphi 0, %s95
      %s115 = sphi 0, %s117
      %s118 = sphi 0, %s115
      %s119 = sphi 0, %s118
      %s135 = sphi 0, %s119
    $region4: #{tpu_custom_call.1} parent=1 // loop_header_branch
      %19 = sbr.rel (%p17) target = $region8
    $region5: #{tpu_custom_call.1} parent=1 // loop_body
      %s21 = ssub.s32 %s16, 1
      %s22 = ssub.s32 %s16, 2
      %s23 = sadd.s32 %s16, 1
      %s24 = ssub.s32 %s16, %s23
      %p25 = scmp.eq.s32.totalorder %s24, 0
      %s27 = sadd.s32 %s26, 1
      %s28 = scalar_select %p25, %s26, %s27
      %p31 = pneg %p25
      %p32 = scmp.eq.s32.totalorder %s16, 1
      %p33 = por %p31, %p32
      %p34 = scmp.ne.s32.totalorder %s26, %s29
      %p35 = scmp.eq.s32.totalorder %s16, 0
      %p36 = por %p34, %p35
      %p37 = scmp.ne.s32.totalorder %s26, %s29
      %p38 = scmp.eq.s32.totalorder %s21, 1
      %p39 = por %p37, %p38
      %p40 = scmp.ne.s32.totalorder %s29, %s30
      %p41 = scmp.eq.s32.totalorder %s21, 0
      %p42 = por %p40, %p41
      %p43 = scmp.ne.s32.totalorder %s29, %s30
      %p44 = scmp.eq.s32.totalorder %s22, 1
      %p45 = por %p43, %p44
      %p47 = scmp.ne.s32.totalorder %s30, %s46
      %p48 = scmp.eq.s32.totalorder %s22, 0
      %p49 = por %p47, %p48
      %s51 = sadd.s32 %s50, 1
      %p54 = scmp.eq.s32.totalorder %s16, 1
      %p55 = scmp.ne.s32.totalorder %s50, %s52
      %p56 = scmp.eq.s32.totalorder %s16, 0
      %p57 = por %p55, %p56
      %p58 = scmp.ne.s32.totalorder %s50, %s52
      %p59 = scmp.eq.s32.totalorder %s21, 1
      %p60 = por %p58, %p59
      %p61 = scmp.ne.s32.totalorder %s52, %s53
      %p62 = scmp.eq.s32.totalorder %s21, 0
      %p63 = por %p61, %p62
      %p64 = scmp.ne.s32.totalorder %s52, %s53
      %p65 = scmp.eq.s32.totalorder %s22, 1
      %p66 = por %p64, %p65
      %p68 = scmp.ne.s32.totalorder %s53, %s67
      %p69 = scmp.eq.s32.totalorder %s22, 0
      %p70 = por %p68, %p69
      %s72 = sadd.s32 %s71, 1
      %p75 = scmp.eq.s32.totalorder %s16, 1
      %p76 = scmp.ne.s32.totalorder %s71, %s73
      %p77 = scmp.eq.s32.totalorder %s16, 0
      %p78 = por %p76, %p77
      %p79 = scmp.ne.s32.totalorder %s71, %s73
      %p80 = scmp.eq.s32.totalorder %s21, 1
      %p81 = por %p79, %p80
      %p82 = scmp.ne.s32.totalorder %s73, %s74
      %p83 = scmp.eq.s32.totalorder %s21, 0
      %p84 = por %p82, %p83
      %p85 = scmp.ne.s32.totalorder %s73, %s74
      %p86 = scmp.eq.s32.totalorder %s22, 1
      %p87 = por %p85, %p86
      %p89 = scmp.ne.s32.totalorder %s74, %s88
      %p90 = scmp.eq.s32.totalorder %s22, 0
      %p91 = por %p89, %p90
      %s93 = sadd.s32 %s92, 1
      %p96 = scmp.eq.s32.totalorder %s16, 1
      %p97 = scmp.ne.s32.totalorder %s92, %s94
      %p98 = scmp.eq.s32.totalorder %s16, 0
      %p99 = por %p97, %p98
      %p100 = scmp.ne.s32.totalorder %s92, %s94
      %p101 = scmp.eq.s32.totalorder %s21, 1
      %p102 = por %p100, %p101
      %p103 = scmp.ne.s32.totalorder %s94, %s95
      %p104 = scmp.eq.s32.totalorder %s21, 0
      %p105 = por %p103, %p104
      %p106 = scmp.ne.s32.totalorder %s94, %s95
      %p107 = scmp.eq.s32.totalorder %s22, 1
      %p108 = por %p106, %p107
      %p110 = scmp.ne.s32.totalorder %s95, %s109
      %p111 = scmp.eq.s32.totalorder %s22, 0
      %p112 = por %p110, %p111
      %s113 = ssub.s32 %s16, %s23
      %p114 = scmp.eq.s32.totalorder %s113, 0
      %s116 = sadd.s32 %s115, 1
      %s117 = scalar_select %p114, %s115, %s116
      %p120 = pneg %p114
      %p121 = scmp.eq.s32.totalorder %s16, 1
      %p122 = por %p120, %p121
      %p123 = scmp.ne.s32.totalorder %s115, %s118
      %p124 = scmp.eq.s32.totalorder %s16, 0
      %p125 = por %p123, %p124
      %p126 = scmp.ne.s32.totalorder %s115, %s118
      %p127 = scmp.eq.s32.totalorder %s21, 1
      %p128 = por %p126, %p127
      %p129 = scmp.ne.s32.totalorder %s118, %s119
      %p130 = scmp.eq.s32.totalorder %s21, 0
      %p131 = por %p129, %p130
      %p132 = scmp.ne.s32.totalorder %s118, %s119
      %p133 = scmp.eq.s32.totalorder %s22, 1
      %p134 = por %p132, %p133
      %p136 = scmp.ne.s32.totalorder %s119, %s135
      %p137 = scmp.eq.s32.totalorder %s22, 0
      %p138 = por %p136, %p137
      %p139 = scmp.le.s32.totalorder 1, %s16
      %p140 = scmp.lt.s32.totalorder %s16, 3
      %p141 = pnand %p139, %p140
      %p142 = pneg %p141
      // Predicated region
      $region9: #{tpu_custom_call.1} parent=5 // pred_check
        _
      $region10: #{tpu_custom_call.1} parent=5 // pred_check_branch
        %144 = sbr.rel (%p141) target = $region12
      $region11: #{tpu_custom_call.1} parent=5 // pred_region
        %s145 = ssub.s32 %s16, 1
        // Predicated region
        $region13: #{tpu_custom_call.1} parent=11 // pred_check
          %p146 = pneg %p63
        $region14: #{tpu_custom_call.1} parent=11 // pred_check_branch
          %148 = sbr.rel (%p146) target = $region16
        $region15: #{tpu_custom_call.1} parent=11 // pred_region
          _
        $region16: #{tpu_custom_call.1} parent=11 // pred_fallthru
          _
        // Predicated region
        $region17: #{tpu_custom_call.1} parent=11 // pred_check
          %p149 = pneg %p84
        $region18: #{tpu_custom_call.1} parent=11 // pred_check_branch
          %151 = sbr.rel (%p149) target = $region20
        $region19: #{tpu_custom_call.1} parent=11 // pred_region
          _
        $region20: #{tpu_custom_call.1} parent=11 // pred_fallthru
          _
        // Predicated region
        $region21: #{tpu_custom_call.1} parent=11 // pred_check
          %p152 = pneg %p105
        $region22: #{tpu_custom_call.1} parent=11 // pred_check_branch
          %154 = sbr.rel (%p152) target = $region24
        $region23: #{tpu_custom_call.1} parent=11 // pred_region
          _
        $region24: #{tpu_custom_call.1} parent=11 // pred_fallthru
          _
      $region12: #{tpu_custom_call.1} parent=5 // pred_fallthru
        _
      %p155 = scmp.lt.s32.totalorder %s16, 2
      // Predicated region
      $region25: #{tpu_custom_call.1} parent=5 // pred_check
        %p156 = pneg %p155
      $region26: #{tpu_custom_call.1} parent=5 // pred_check_branch
        %158 = sbr.rel (%p156) target = $region28
      $region27: #{tpu_custom_call.1} parent=5 // pred_region
        // Predicated region
        $region29: #{tpu_custom_call.1} parent=27 // pred_check
          %p159 = pneg %p36
        $region30: #{tpu_custom_call.1} parent=27 // pred_check_branch
          %161 = sbr.rel (%p159) target = $region32
        $region31: #{tpu_custom_call.1} parent=27 // pred_region
          %s162 = sand.u32 %s26, 1
          %s163 = scalar_lea.sflag [#allocation3], %s162
          %s164 = sand.u32 %s26, 1
          %s165 = smul.addr %s164, 64
          %s166 = scalar_lea.vmem [#allocation2], %s165
          %s167 = smul.u32 8, %s16
          %s169 = ssub.s32 1024, 1024
          %170 = vsyncadd %s163, %s169
          %s171 = smul.addr %s167, 128
          %s172 = scalar_lea.hbm %s0, %s171
          %s173 = sshll.u32 %s166, 4
          %s174 = int_to_ptr.vmem [resolvable:$true] %s173
          %179 = dma.hbm_to_vmem [thread:$0]  %s172, 1024, %s174, %s163, 128, 128, 8
        $region32: #{tpu_custom_call.1} parent=27 // pred_fallthru
          _
      $region28: #{tpu_custom_call.1} parent=5 // pred_fallthru
        _
      %p180 = scmp.le.s32.totalorder 1, %s16
      %p181 = scmp.lt.s32.totalorder %s16, 3
      %p182 = pnand %p180, %p181
      %p183 = pneg %p182
      // Predicated region
      $region33: #{tpu_custom_call.1} parent=5 // pred_check
        _
      $region34: #{tpu_custom_call.1} parent=5 // pred_check_branch
        %185 = sbr.rel (%p182) target = $region36
      $region35: #{tpu_custom_call.1} parent=5 // pred_region
        %s186 = ssub.s32 %s16, 1
        %s187 = sand.u32 %s29, 1
        %s188 = scalar_lea.sflag [#allocation3], %s187
        %s189 = sand.u32 %s29, 1
        %s190 = smul.addr %s189, 64
        %s191 = scalar_lea.vmem [#allocation2], %s190
        // Predicated region
        $region37: #{tpu_custom_call.1} parent=35 // pred_check
          %p192 = pneg %p42
        $region38: #{tpu_custom_call.1} parent=35 // pred_check_branch
          %194 = sbr.rel (%p192) target = $region40
        $region39: #{tpu_custom_call.1} parent=35 // pred_region
          %195 = dma.done %s188, 1024
        $region40: #{tpu_custom_call.1} parent=35 // pred_fallthru
          _
        %s196 = sand.u32 %s29, 1
        %s197 = scalar_lea.sflag [#allocation3], %s196
        %s198 = sand.u32 %s29, 1
        %s199 = smul.addr %s198, 64
        %s200 = scalar_lea.vmem [#allocation2], %s199
        %p201 = pneg %p42
        %p202 = pneg %p39
        %p203 = pneg %p63
        %p204 = pneg %p60
        %p205 = pneg %p84
        %p206 = pneg %p81
        %p207 = pneg %p105
        %p208 = pneg %p102
        %p209 = pneg %p131
        %p210 = pneg %p128
        %s211 = sand.u32 %s118, 1
        %s212 = scalar_lea.sflag [#allocation4], %s211
        %s213 = sand.u32 %s118, 1
        %s214 = smul.addr %s213, 8
        %s215 = scalar_lea.vmem [#allocation5], %s214
        %s216 = smul.u32 8, %s21
        %v217 = vld [vmem:[%s191] sm:$0xff]
        %v218 = vld [vmem:[%s191 + $0x8] sm:$0xff]
        %v219 = vld [vmem:[%s191 + $0x10] sm:$0xff]
        %v220 = vld [vmem:[%s191 + $0x18] sm:$0xff]
        %v221 = vld [vmem:[%s191 + $0x20] sm:$0xff]
        %v222 = vld [vmem:[%s191 + $0x28] sm:$0xff]
        %v223 = vld [vmem:[%s191 + $0x30] sm:$0xff]
        %v224 = vld [vmem:[%s191 + $0x38] sm:$0xff]
        %v225 = vld [vmem:[%s1] sm:$0xff]
        %v226 = vld [vmem:[%s1 + $0x8] sm:$0xff]
        %v227 = vld [vmem:[%s1 + $0x10] sm:$0xff]
        %v228 = vld [vmem:[%s1 + $0x18] sm:$0xff]
        %v229 = vld [vmem:[%s2] sm:$0x1]
        %v231 = vlaneseq
        %v232 = vshrl.u32 %v231, 7
        %v233 = vsub.s32 0, %v232
        %v234 = vrot.slane %v229, %v233
        %vm236 = vcmask 261120
        %v238 = vsel %vm236, %v217, 0
        %v241 = vsel %vm236, %v218, 0
        %v244 = vsel %vm236, %v219, 0
        %v247 = vsel %vm236, %v220, 0
        %v250 = vsel %vm236, %v221, 0
        %v253 = vsel %vm236, %v222, 0
        %v256 = vsel %vm236, %v223, 0
        %v259 = vsel %vm236, %v224, 0
        %261 = vmatprep.subr.mxu0 0.0
        %262 = vmatpush1.msra.mxu0 0.0
        %263 = vmatprep.subr.mxu0 0.0
        %264 = vmatpush1.msra.mxu0 0.0
        %265 = vmatprep.subr.mxu0 0.0
        %266 = vmatpush1.msra.mxu0 0.0
        %267 = vmatprep.subr.mxu0 0.0
        %268 = vmatpush1.msra.mxu0 0.0
        %269 = vmatprep.subr.mxu0 0.0
        %270 = vmatpush1.msra.mxu0 0.0
        %271 = vmatprep.subr.mxu0 0.0
        %272 = vmatpush1.msra.mxu0 0.0
        %273 = vmatprep.subr.mxu0 0.0
        %274 = vmatpush1.msra.mxu0 0.0
        %275 = vmatprep.subr.mxu0 0.0
        %276 = vmatpush1.msra.mxu0 0.0
        %277 = vmatprep.subr.mxu0 0.0
        %278 = vmatpush1.msra.mxu0 0.0
        %279 = vmatprep.subr.mxu0 0.0
        %280 = vmatpush1.msra.mxu0 0.0
        %281 = vmatprep.subr.mxu0 0.0
        %282 = vmatpush1.msra.mxu0 0.0
        %283 = vmatprep.subr.mxu0 0.0
        %284 = vmatpush1.msra.mxu0 0.0
        %285 = vmatprep.subr.mxu0 0.0
        %286 = vmatpush1.msra.mxu0 %v228
        %287 = vmatprep.subr.mxu0 0.0
        %288 = vmatpush1.msra.mxu0 %v227
        %289 = vmatprep.subr.mxu0 0.0
        %290 = vmatpush1.msra.mxu0 %v226
        %291 = vmatprep.subr.mxu0 0.0
        %292 = vmatpush1.msra.mxu0 %v225
        %293 = vmatprep.subr.mxu0 0.0
        %294 = vmatpush2.msra.mxu0 0.0
        %295 = vmatprep.subr.mxu0 0.0
        %296 = vmatpush2.msra.mxu0 0.0
        %297 = vmatprep.subr.mxu0 0.0
        %298 = vmatpush2.msra.mxu0 0.0
        %299 = vmatprep.subr.mxu0 0.0
        %300 = vmatpush2.msra.mxu0 0.0
        %301 = vmatprep.subr.mxu0 0.0
        %302 = vmatpush2.msra.mxu0 0.0
        %303 = vmatprep.subr.mxu0 0.0
        %304 = vmatpush2.msra.mxu0 0.0
        %305 = vmatprep.subr.mxu0 0.0
        %306 = vmatpush2.msra.mxu0 0.0
        %307 = vmatprep.subr.mxu0 0.0
        %308 = vmatpush2.msra.mxu0 0.0
        %309 = vmatprep.subr.mxu0 0.0
        %310 = vmatpush2.msra.mxu0 0.0
        %311 = vmatprep.subr.mxu0 0.0
        %312 = vmatpush2.msra.mxu0 0.0
        %313 = vmatprep.subr.mxu0 0.0
        %314 = vmatpush2.msra.mxu0 0.0
        %315 = vmatprep.subr.mxu0 0.0
        %316 = vmatpush2.msra.mxu0 0.0
        %317 = vmatprep.subr.mxu0 0.0
        %318 = vmatpush2.msra.mxu0 0.0
        %319 = vmatprep.subr.mxu0 0.0
        %320 = vmatpush2.msra.mxu0 0.0
        %321 = vmatprep.subr.mxu0 0.0
        %322 = vmatpush2.msra.mxu0 0.0
        %323 = vmatprep.subr.mxu0 0.0
        %324 = vmatpush2.msra.mxu0 0.0
        %325 = vmatprep.mubr.f32.mxu0 0.0
        %326 = vmatmul.mubr.f32.gmra.mxu0 %v238
        %v327 = vpop.f32.mrf.mxu0
        %v328 = vadd.f32 %v234, %v327
        %v329 = vpop.f32.mrf.mxu0
        %330 = vmatprep.mubr.f32.mxu0 0.0
        %331 = vmatmul.mubr.f32.gmra.mxu0 %v241
        %v332 = vpop.f32.mrf.mxu0
        %v333 = vadd.f32 %v234, %v332
        %v334 = vpop.f32.mrf.mxu0
        %335 = vmatprep.mubr.f32.mxu0 0.0
        %336 = vmatmul.mubr.f32.gmra.mxu0 %v244
        %v337 = vpop.f32.mrf.mxu0
        %v338 = vadd.f32 %v234, %v337
        %v339 = vpop.f32.mrf.mxu0
        %340 = vmatprep.mubr.f32.mxu0 0.0
        %341 = vmatmul.mubr.f32.gmra.mxu0 %v247
        %v342 = vpop.f32.mrf.mxu0
        %v343 = vadd.f32 %v234, %v342
        %v344 = vpop.f32.mrf.mxu0
        %345 = vmatprep.mubr.f32.mxu0 0.0
        %346 = vmatmul.mubr.f32.gmra.mxu0 %v250
        %v347 = vpop.f32.mrf.mxu0
        %v348 = vadd.f32 %v234, %v347
        %v349 = vpop.f32.mrf.mxu0
        %350 = vmatprep.mubr.f32.mxu0 0.0
        %351 = vmatmul.mubr.f32.gmra.mxu0 %v253
        %v352 = vpop.f32.mrf.mxu0
        %v353 = vadd.f32 %v234, %v352
        %v354 = vpop.f32.mrf.mxu0
        %355 = vmatprep.mubr.f32.mxu0 0.0
        %356 = vmatmul.mubr.f32.gmra.mxu0 %v256
        %v357 = vpop.f32.mrf.mxu0
        %v358 = vadd.f32 %v234, %v357
        %v359 = vpop.f32.mrf.mxu0
        %360 = vmatprep.mubr.f32.mxu0 0.0
        %361 = vmatmul.mubr.f32.gmra.mxu0 %v259
        %v362 = vpop.f32.mrf.mxu0
        %v363 = vadd.f32 %v234, %v362
        %v364 = vpop.f32.mrf.mxu0
        %365 = vdwg.mxu0
        %v366 = vtanh.pop %v328
        %v367 = vtanh.pop %v333
        %v368 = vtanh.pop %v338
        %v369 = vtanh.pop %v343
        %v370 = vtanh.pop %v348
        %v371 = vtanh.pop %v353
        %v372 = vtanh.pop %v358
        %v373 = vtanh.pop %v363
        %v374 = vld [vmem:[%s3] sm:$0x1]
        %v376 = vlaneseq
        %v377 = vshrl.u32 %v376, 7
        %v378 = vsub.s32 0, %v377
        %v379 = vrot.slane %v374, %v378
        %v381 = vmul.f32 %v366, %v379
        %v382 = vmul.f32 %v367, %v379
        %v383 = vmul.f32 %v368, %v379
        %v384 = vmul.f32 %v369, %v379
        %v385 = vmul.f32 %v370, %v379
        %v386 = vmul.f32 %v371, %v379
        %v387 = vmul.f32 %v372, %v379
        %v388 = vmul.f32 %v373, %v379
        %vm389 = vcmask 130048
        %v390 = vsel %vm389, %v381, 0.0
        %391 = vadd.xlane.f32.xlu0 %v390
        %v392 = vpop.xlane.xlu0 %391
        %v393 = vsel %vm389, %v382, 0.0
        %394 = vadd.xlane.f32.xlu0 %v393
        %v395 = vpop.xlane.xlu0 %394
        %v396 = vsel %vm389, %v383, 0.0
        %397 = vadd.xlane.f32.xlu0 %v396
        %v398 = vpop.xlane.xlu0 %397
        %v399 = vsel %vm389, %v384, 0.0
        %400 = vadd.xlane.f32.xlu0 %v399
        %v401 = vpop.xlane.xlu0 %400
        %v402 = vsel %vm389, %v385, 0.0
        %403 = vadd.xlane.f32.xlu0 %v402
        %v404 = vpop.xlane.xlu0 %403
        %v405 = vsel %vm389, %v386, 0.0
        %406 = vadd.xlane.f32.xlu0 %v405
        %v407 = vpop.xlane.xlu0 %406
        %v408 = vsel %vm389, %v387, 0.0
        %409 = vadd.xlane.f32.xlu0 %v408
        %v410 = vpop.xlane.xlu0 %409
        %v411 = vsel %vm389, %v388, 0.0
        %412 = vadd.xlane.f32.xlu0 %v411
        %v413 = vpop.xlane.xlu0 %412
        %v414 = vrot.slane %v392, 4
        %v415 = vmax.f32 %v392, %v414
        %v416 = vrot.slane %v415, 2
        %v417 = vmax.f32 %v415, %v416
        %v418 = vrot.slane %v417, 1
        %v419 = vmax.f32 %v417, %v418
        %v420 = vrot.slane %v395, 4
        %v421 = vmax.f32 %v395, %v420
        %v422 = vrot.slane %v421, 2
        %v423 = vmax.f32 %v421, %v422
        %v424 = vrot.slane %v423, 1
        %v425 = vmax.f32 %v423, %v424
        %v426 = vrot.slane %v398, 4
        %v427 = vmax.f32 %v398, %v426
        %v428 = vrot.slane %v427, 2
        %v429 = vmax.f32 %v427, %v428
        %v430 = vrot.slane %v429, 1
        %v431 = vmax.f32 %v429, %v430
        %v432 = vrot.slane %v401, 4
        %v433 = vmax.f32 %v401, %v432
        %v434 = vrot.slane %v433, 2
        %v435 = vmax.f32 %v433, %v434
        %v436 = vrot.slane %v435, 1
        %v437 = vmax.f32 %v435, %v436
        %v438 = vrot.slane %v404, 4
        %v439 = vmax.f32 %v404, %v438
        %v440 = vrot.slane %v439, 2
        %v441 = vmax.f32 %v439, %v440
        %v442 = vrot.slane %v441, 1
        %v443 = vmax.f32 %v441, %v442
        %v444 = vrot.slane %v407, 4
        %v445 = vmax.f32 %v407, %v444
        %v446 = vrot.slane %v445, 2
        %v447 = vmax.f32 %v445, %v446
        %v448 = vrot.slane %v447, 1
        %v449 = vmax.f32 %v447, %v448
        %v450 = vrot.slane %v410, 4
        %v451 = vmax.f32 %v410, %v450
        %v452 = vrot.slane %v451, 2
        %v453 = vmax.f32 %v451, %v452
        %v454 = vrot.slane %v453, 1
        %v455 = vmax.f32 %v453, %v454
        %v456 = vrot.slane %v413, 4
        %v457 = vmax.f32 %v413, %v456
        %v458 = vrot.slane %v457, 2
        %v459 = vmax.f32 %v457, %v458
        %v460 = vrot.slane %v459, 1
        %v461 = vmax.f32 %v459, %v460
        %v462 = vsub.f32 %v392, %v419
        %v463 = vsub.f32 %v395, %v425
        %v464 = vsub.f32 %v398, %v431
        %v465 = vsub.f32 %v401, %v437
        %v466 = vsub.f32 %v404, %v443
        %v467 = vsub.f32 %v407, %v449
        %v468 = vsub.f32 %v410, %v455
        %v469 = vsub.f32 %v413, %v461
        %v470 = vmul.f32 %v462, 1.442695
        %v471 = vpow.pop %v470
        %v472 = vmul.f32 %v463, 1.442695
        %v473 = vpow.pop %v472
        %v474 = vmul.f32 %v464, 1.442695
        %v475 = vpow.pop %v474
        %v476 = vmul.f32 %v465, 1.442695
        %v477 = vpow.pop %v476
        %v478 = vmul.f32 %v466, 1.442695
        %v479 = vpow.pop %v478
        %v480 = vmul.f32 %v467, 1.442695
        %v481 = vpow.pop %v480
        %v482 = vmul.f32 %v468, 1.442695
        %v483 = vpow.pop %v482
        %v484 = vmul.f32 %v469, 1.442695
        %v485 = vpow.pop %v484
        %v486 = vrot.slane %v471, 4
        %v487 = vadd.f32 %v471, %v486
        %v488 = vrot.slane %v487, 2
        %v489 = vadd.f32 %v487, %v488
        %v490 = vrot.slane %v489, 1
        %v491 = vadd.f32 %v489, %v490
        %v492 = vrot.slane %v473, 4
        %v493 = vadd.f32 %v473, %v492
        %v494 = vrot.slane %v493, 2
        %v495 = vadd.f32 %v493, %v494
        %v496 = vrot.slane %v495, 1
        %v497 = vadd.f32 %v495, %v496
        %v498 = vrot.slane %v475, 4
        %v499 = vadd.f32 %v475, %v498
        %v500 = vrot.slane %v499, 2
        %v501 = vadd.f32 %v499, %v500
        %v502 = vrot.slane %v501, 1
        %v503 = vadd.f32 %v501, %v502
        %v504 = vrot.slane %v477, 4
        %v505 = vadd.f32 %v477, %v504
        %v506 = vrot.slane %v505, 2
        %v507 = vadd.f32 %v505, %v506
        %v508 = vrot.slane %v507, 1
        %v509 = vadd.f32 %v507, %v508
        %v510 = vrot.slane %v479, 4
        %v511 = vadd.f32 %v479, %v510
        %v512 = vrot.slane %v511, 2
        %v513 = vadd.f32 %v511, %v512
        %v514 = vrot.slane %v513, 1
        %v515 = vadd.f32 %v513, %v514
        %v516 = vrot.slane %v481, 4
        %v517 = vadd.f32 %v481, %v516
        %v518 = vrot.slane %v517, 2
        %v519 = vadd.f32 %v517, %v518
        %v520 = vrot.slane %v519, 1
        %v521 = vadd.f32 %v519, %v520
        %v522 = vrot.slane %v483, 4
        %v523 = vadd.f32 %v483, %v522
        %v524 = vrot.slane %v523, 2
        %v525 = vadd.f32 %v523, %v524
        %v526 = vrot.slane %v525, 1
        %v527 = vadd.f32 %v525, %v526
        %v528 = vrot.slane %v485, 4
        %v529 = vadd.f32 %v485, %v528
        %v530 = vrot.slane %v529, 2
        %v531 = vadd.f32 %v529, %v530
        %v532 = vrot.slane %v531, 1
        %v533 = vadd.f32 %v531, %v532
        %v534 = vrcp.pop %v491
        %v535 = vrcp.pop %v497
        %v536 = vrcp.pop %v503
        %v537 = vrcp.pop %v509
        %v538 = vrcp.pop %v515
        %v539 = vrcp.pop %v521
        %v540 = vrcp.pop %v527
        %v541 = vrcp.pop %v533
        %v542 = vmul.f32 %v471, %v217
        %v543 = vmul.f32 %v473, %v218
        %v544 = vmul.f32 %v475, %v219
        %v545 = vmul.f32 %v477, %v220
        %v546 = vmul.f32 %v479, %v221
        %v547 = vmul.f32 %v481, %v222
        %v548 = vmul.f32 %v483, %v223
        %v549 = vmul.f32 %v485, %v224
        %v550 = vsel %vm236, %v542, 0.0
        %v551 = vrot.slane %v550, 4
        %v552 = vadd.f32 %v550, %v551
        %v553 = vrot.slane %v552, 2
        %v554 = vadd.f32 %v552, %v553
        %v555 = vrot.slane %v554, 1
        %v556 = vadd.f32 %v554, %v555
        %v557 = vsel %vm236, %v543, 0.0
        %v558 = vrot.slane %v557, 4
        %v559 = vadd.f32 %v557, %v558
        %v560 = vrot.slane %v559, 2
        %v561 = vadd.f32 %v559, %v560
        %v562 = vrot.slane %v561, 1
        %v563 = vadd.f32 %v561, %v562
        %v564 = vsel %vm236, %v544, 0.0
        %v565 = vrot.slane %v564, 4
        %v566 = vadd.f32 %v564, %v565
        %v567 = vrot.slane %v566, 2
        %v568 = vadd.f32 %v566, %v567
        %v569 = vrot.slane %v568, 1
        %v570 = vadd.f32 %v568, %v569
        %v571 = vsel %vm236, %v545, 0.0
        %v572 = vrot.slane %v571, 4
        %v573 = vadd.f32 %v571, %v572
        %v574 = vrot.slane %v573, 2
        %v575 = vadd.f32 %v573, %v574
        %v576 = vrot.slane %v575, 1
        %v577 = vadd.f32 %v575, %v576
        %v578 = vsel %vm236, %v546, 0.0
        %v579 = vrot.slane %v578, 4
        %v580 = vadd.f32 %v578, %v579
        %v581 = vrot.slane %v580, 2
        %v582 = vadd.f32 %v580, %v581
        %v583 = vrot.slane %v582, 1
        %v584 = vadd.f32 %v582, %v583
        %v585 = vsel %vm236, %v547, 0.0
        %v586 = vrot.slane %v585, 4
        %v587 = vadd.f32 %v585, %v586
        %v588 = vrot.slane %v587, 2
        %v589 = vadd.f32 %v587, %v588
        %v590 = vrot.slane %v589, 1
        %v591 = vadd.f32 %v589, %v590
        %v592 = vsel %vm236, %v548, 0.0
        %v593 = vrot.slane %v592, 4
        %v594 = vadd.f32 %v592, %v593
        %v595 = vrot.slane %v594, 2
        %v596 = vadd.f32 %v594, %v595
        %v597 = vrot.slane %v596, 1
        %v598 = vadd.f32 %v596, %v597
        %v599 = vsel %vm236, %v549, 0.0
        %v600 = vrot.slane %v599, 4
        %v601 = vadd.f32 %v599, %v600
        %v602 = vrot.slane %v601, 2
        %v603 = vadd.f32 %v601, %v602
        %v604 = vrot.slane %v603, 1
        %v605 = vadd.f32 %v603, %v604
        %v606 = vmul.f32 %v556, %v534
        %v607 = vmul.f32 %v563, %v535
        %v608 = vmul.f32 %v570, %v536
        %v609 = vmul.f32 %v577, %v537
        %v610 = vmul.f32 %v584, %v538
        %v611 = vmul.f32 %v591, %v539
        %v612 = vmul.f32 %v598, %v540
        %v613 = vmul.f32 %v605, %v541
        %vm622 = vcmask 1041409
        %v623 = vsel %vm622, %v607, %v606
        %vm624 = vcmask 1042434
        %v625 = vsel %vm624, %v608, %v623
        %vm626 = vcmask 1043459
        %v627 = vsel %vm626, %v609, %v625
        %vm628 = vcmask 1044484
        %v629 = vsel %vm628, %v610, %v627
        %vm630 = vcmask 1045509
        %v631 = vsel %vm630, %v611, %v629
        %vm632 = vcmask 1046534
        %v633 = vsel %vm632, %v612, %v631
        %vm634 = vcmask 1047559
        %v635 = vsel %vm634, %v613, %v633
        %637 = vst.msk [vmem:[%s215] sm:$0xff] %vm236, %v635
        %s638 = sand.u32 %s118, 1
        %s639 = scalar_lea.sflag [#allocation4], %s638
        %s640 = sand.u32 %s118, 1
        %s641 = smul.addr %s640, 8
        %s642 = scalar_lea.vmem [#allocation5], %s641
        // Predicated region
        $region41: #{tpu_custom_call.1} parent=35 // pred_check
          %p643 = pneg %p128
        $region42: #{tpu_custom_call.1} parent=35 // pred_check_branch
          %645 = sbr.rel (%p643) target = $region44
        $region43: #{tpu_custom_call.1} parent=35 // pred_region
          %s647 = ssub.s32 128, 128
          %648 = vsyncadd %s639, %s647
          %s649 = smul.addr %s21, 128
          %s650 = scalar_lea.hbm %s4, %s649
          %s652 = sshll.u32 %s642, 4
          %s653 = int_to_ptr.vmem [resolvable:$true] %s652
          %655 = dma.vmem_to_hbm [thread:$0]  %s653, 128, %s650, %s639
        $region44: #{tpu_custom_call.1} parent=35 // pred_fallthru
          _
      $region36: #{tpu_custom_call.1} parent=5 // pred_fallthru
        _
      %p656 = scmp.le.s32.totalorder 2, %s16
      // Predicated region
      $region45: #{tpu_custom_call.1} parent=5 // pred_check
        %p657 = pneg %p656
      $region46: #{tpu_custom_call.1} parent=5 // pred_check_branch
        %659 = sbr.rel (%p657) target = $region48
      $region47: #{tpu_custom_call.1} parent=5 // pred_region
        %s660 = ssub.s32 %s16, 2
        // Predicated region
        $region49: #{tpu_custom_call.1} parent=47 // pred_check
          %p661 = pneg %p134
        $region50: #{tpu_custom_call.1} parent=47 // pred_check_branch
          %663 = sbr.rel (%p661) target = $region52
        $region51: #{tpu_custom_call.1} parent=47 // pred_region
          %s664 = sand.u32 %s119, 1
          %s665 = scalar_lea.sflag [#allocation4], %s664
          %s666 = sand.u32 %s119, 1
          %s667 = smul.addr %s666, 8
          %s668 = scalar_lea.vmem [#allocation5], %s667
          %669 = dma.done %s665, 128
        $region52: #{tpu_custom_call.1} parent=47 // pred_fallthru
          _
      $region48: #{tpu_custom_call.1} parent=5 // pred_fallthru
        _
    $region6: #{tpu_custom_call.1} parent=1 // loop_footer
      %s20 = sadd.s32 1, %s16
    $region7: #{tpu_custom_call.1} parent=1 // loop_footer_branch
      %15 = sbr.rel target = $region3
    $region8: #{tpu_custom_call.1} parent=1 // loop_exit
      _
    %670 = vsyncpa [#allocation3], 1
    %s671 = scalar_lea.sflag [#allocation3], 1
    %672 = vsyncpa %s671, 1
    %673 = vsyncpa [#allocation4], 1
    %s674 = scalar_lea.sflag [#allocation4], 1
    %675 = vsyncpa %s674, 1

</llo_original>
